<compile_context>
chip_gen: v7x
topology: tpu7x:2x2x1
jax: 0.10.0
libtpu: 0.0.40
codegen_flags: <defaults>
</compile_context>

<pallas_src>
from functools import partial

import jax
import jax.numpy as jnp
from jax import lax
from jax.experimental import pallas as pl
from jax.experimental.pallas import tpu as pltpu


def lsa_kernel(g_ref, x_ref, xt_ref, *rest, tile_j, has_pad, use_bf16_exp):
    """One (batch, j-tile) grid step.

    g_ref    : SMEM (3,) f32            [gamma_psa, gamma_csa, gamma_layer]
    x_ref    : VMEM (1, c, S) f32       full flattened input (resident across j steps)
    xt_ref   : VMEM (1, tile_j, c) bf16 j-th row tile of x^T (pipelined)
    mask_ref : VMEM (1, S) f32          additive key-padding mask (present iff has_pad)
    o_ref    : VMEM (1, c, S) f32       output block; doubles as the pixel-branch accumulator
    xbf_ref  : VMEM (c, S) bf16         bf16 cache of x, written once per batch
    ecc_ref  : VMEM (c, c) f32          channel-branch energy accumulator
    """
    if has_pad:
        mask_ref, o_ref, xbf_ref, ecc_ref = rest
    else:
        o_ref, xbf_ref, ecc_ref = rest
        mask_ref = None

    ji = pl.program_id(1)
    nj = pl.num_programs(1)

    @pl.when(ji == 0)
    def _init():
        ecc_ref[...] = jnp.zeros_like(ecc_ref)
        xbf_ref[...] = x_ref[0].astype(jnp.bfloat16)     # one cast per batch, not per step

    xt_j = xt_ref[0]                                     # (tile_j, c) bf16
    x_bf = xbf_ref[...]                                  # (c, S)      bf16

    # ---- Pixel branch: un-normalized row softmax of E[j_tile, :] = X[:, j_tile]^T @ X ----
    e = jnp.dot(xt_j, x_bf, preferred_element_type=jnp.float32)      # (tile_j, S) f32
    if has_pad:
        e = e + mask_ref[...]                            # single add; mask precomputed
    m = jnp.max(e, axis=-1, keepdims=True)               # (tile_j, 1) f32
    if use_bf16_exp:
        p = jnp.exp((e - m).astype(jnp.bfloat16))        # bf16 EUP path (v6e / v7x)
        l = jnp.sum(p, axis=-1, keepdims=True, dtype=jnp.float32)
    else:
        p32 = jnp.exp(e - m)                             # f32 path (v5e and older)
        l = jnp.sum(p32, axis=-1, keepdims=True)
        p = p32.astype(jnp.bfloat16)
    r = pl.reciprocal(l, approx=True)                    # (tile_j, 1) f32, EUP slot

    # Normalization folded into the small operand: (X[:, j]/l[j]) @ p  ==  X[:, j] @ (p/l).
    xs_t = jnp.transpose(r * xt_j).astype(jnp.bfloat16)              # (c, tile_j) bf16
    contrib = jnp.dot(xs_t, p, preferred_element_type=jnp.float32)   # (c, S) f32

    @pl.when(ji == 0)
    def _first():
        o_ref[0] = contrib                               # no separate zero-init sweep

    @pl.when(ji != 0)
    def _accum():
        o_ref[0] += contrib

    # ---- Channel branch energy: X[:, j_tile] @ X[:, j_tile]^T, accumulated over tiles ----
    start = pl.multiple_of(ji * tile_j, 128)
    x_j_bf = xbf_ref[:, pl.ds(start, tile_j)]            # (c, tile_j) bf16, from cache
    ecc_ref[...] += jnp.dot(x_j_bf, xt_j, preferred_element_type=jnp.float32)

    @pl.when(ji == nj - 1)
    def _finalize():
        g_psa = g_ref[0]
        g_csa = g_ref[1]
        g_lay = g_ref[2]

        e_c = ecc_ref[...]                               # (c, c) f32
        m_c = jnp.max(e_c, axis=-1, keepdims=True)
        p_c = jnp.exp(e_c - m_c)
        a_c = p_c * pl.reciprocal(jnp.sum(p_c, axis=-1, keepdims=True), approx=True)
        out_c = jnp.dot(a_c.astype(jnp.bfloat16), x_bf,
                        preferred_element_type=jnp.float32)          # (c, S) f32

        x32 = x_ref[0]                                   # exact f32 for the 2*x tail
        # out = gamma_layer * (psa + csa) with psa/csa = gamma*out_branch + x.
        o_ref[0] = (g_lay * (g_psa * o_ref[0] + g_csa * out_c + 2.0 * x32)
                    ).astype(o_ref.dtype)


def layer_self_attention(x, gamma_psa, gamma_csa, gamma_layer, *, tile_j=256):
    """x: (b, c, h, w) float32; gammas: python scalars. Returns (b, c, h, w) float32."""
    b, c, h, w = x.shape
    s = h * w
    x_flat = x.reshape(b, c, s).astype(jnp.float32)

    # Pad the spatial axis to a lane multiple only (decoupled from tile_j).
    s_pad = ((s + 127) // 128) * 128
    has_pad = s_pad != s
    if has_pad:
        x_flat = jnp.pad(x_flat, ((0, 0), (0, 0), (0, s_pad - s)))

    # tile_j: largest 128-multiple divisor of s_pad not exceeding the request.
    req = max(128, (int(tile_j) // 128) * 128)
    tj = 128
    for t in range(min(req, s_pad), 127, -128):
        if s_pad % t == 0:
            tj = t
            break
    n_j = s_pad // tj

    # One XLA transpose; bf16 since x_t is only ever an MXU operand (halves its DMA bytes).
    x_t_bf = jnp.transpose(x_flat, (0, 2, 1)).astype(jnp.bfloat16)   # (b, S, c)

    # Generation-dependent knobs (safe f32 / small-VMEM defaults when the kind is unknown).
    try:
        kind = jax.devices()[0].device_kind.lower()
    except Exception:
        kind = ""
    use_bf16_exp = ("v6" in kind) or ("v7" in kind) or ("7x" in kind)
    big_vmem = ("v5" in kind) or ("v6" in kind)          # 128 MiB VMEM generations

    gammas = jnp.array([gamma_psa, gamma_csa, gamma_layer], dtype=jnp.float32)

    in_specs = [
        pl.BlockSpec(memory_space=pltpu.MemorySpace.SMEM),            # gammas (3,)
        pl.BlockSpec((1, c, s_pad), lambda bi, ji: (bi, 0, 0)),       # x f32, resident over j
        pl.BlockSpec((1, tj, c), lambda bi, ji: (bi, ji, 0)),         # x^T row tile, bf16
    ]
    args = [gammas, x_flat, x_t_bf]
    if has_pad:
        mask = jnp.where(jnp.arange(s_pad) < s, 0.0, -1e30).astype(jnp.float32)[None, :]
        in_specs.append(pl.BlockSpec((1, s_pad), lambda bi, ji: (0, 0)))
        args.append(mask)

    # VMEM budget: double-buffered inputs/output + scratch + live softmax temporaries.
    vmem_est = (
        2 * c * s_pad * 4              # resident x (f32)
        + 2 * tj * c * 2               # x^T tile (bf16)
        + 2 * c * s_pad * 4            # output block (f32)
        + (2 * s_pad * 4 if has_pad else 0)
        + c * s_pad * 2 + c * c * 4    # scratch: bf16 x cache + channel energy
        + 4 * tj * s_pad * 4           # e / p / conversion temporaries
    )
    vmem_cap = (96 if big_vmem else 48) * 1024 * 1024
    vmem_limit = int(min(max(2 * vmem_est, 16 * 1024 * 1024), vmem_cap))

    kernel = partial(lsa_kernel, tile_j=tj, has_pad=has_pad, use_bf16_exp=use_bf16_exp)

    out_flat = pl.pallas_call(
        kernel,
        out_shape=jax.ShapeDtypeStruct((b, c, s_pad), jnp.float32),
        grid_spec=pltpu.PrefetchScalarGridSpec(
            num_scalar_prefetch=0,
            grid=(b, n_j),
            in_specs=in_specs,
            out_specs=pl.BlockSpec((1, c, s_pad), lambda bi, ji: (bi, 0, 0)),
            scratch_shapes=[
                pltpu.VMEM((c, s_pad), jnp.bfloat16),   # bf16 cache of x (written at ji==0)
                pltpu.VMEM((c, c), jnp.float32),        # channel-branch energy accumulator
            ],
        ),
        compiler_params=pltpu.CompilerParams(
            dimension_semantics=("parallel", "arbitrary"),
            vmem_limit_bytes=vmem_limit,
        ),
    )(*args)

    return out_flat[:, :, :s].reshape(b, c, h, w)


def layer_self_attention_ref(x, gamma_psa, gamma_csa, gamma_layer):
    """Pure-JAX reference matching the PyTorch module exactly (f32 throughout)."""
    b, c, h, w = x.shape
    q = x.reshape(b, c, h * w)                                    # proj_query
    k = jnp.transpose(q, (0, 2, 1))                               # proj_key
    # Pixel_Self_Attention
    e_p = jnp.einsum('bsc,bcd->bsd', k, q)                        # (b, s, s)
    a_p = jax.nn.softmax(e_p, axis=-1)
    psa = gamma_psa * jnp.einsum('bcs,bst->bct', q, a_p).reshape(b, c, h, w) + x
    # Channel_Self_Attention
    e_c = jnp.einsum('bcs,bsd->bcd', q, k)                        # (b, c, c)
    a_c = jax.nn.softmax(e_c, axis=-1)
    csa = gamma_csa * jnp.einsum('bcd,bds->bcs', a_c, q).reshape(b, c, h, w) + x
    return gamma_layer * (psa + csa)


if __name__ == "__main__":
    # The PyTorch module initializes all three gammas to 0 (output would be identically 0);
    # deterministic nonzero values are used so both attention paths are actually exercised.
    gamma_psa, gamma_csa, gamma_layer = 0.1, 0.2, 0.3

    key = jax.random.PRNGKey(0)
    b, c, h, w = 2, 4, 16, 16
    x = jax.random.normal(key, (b, c, h, w), dtype=jnp.float32)

    # tile_j=128 with s=256 gives 2 j-tiles, exercising the accumulate/finalize path.
    out = layer_self_attention(x, gamma_psa, gamma_csa, gamma_layer, tile_j=128)
    out = jax.block_until_ready(out)

    ref = layer_self_attention_ref(x, gamma_psa, gamma_csa, gamma_layer)
    assert out.shape == (b, c, h, w)
    # bf16 MXU operands + approx reciprocal => relaxed tolerance vs the f32 reference.
    assert jnp.allclose(out, ref, atol=2e-2, rtol=2e-2), "mismatch vs reference"

    print("KERNEL_OK")
</pallas_src>

<mosaic_0001>
module attributes {stable_mosaic.version = 11 : i64} {
  func.func @lsa_kernel(%arg0: i32, %arg1: i32, %arg2: memref<3xf32, #tpu.memory_space<smem>>, %arg3: memref<1x4x256xf32, #tpu.memory_space<vmem>>, %arg4: memref<1x128x4xbf16, #tpu.memory_space<vmem>>, %arg5: memref<1x4x256xf32, #tpu.memory_space<vmem>>, %arg6: memref<4x256xbf16, #tpu.memory_space<vmem>>, %arg7: memref<4x4xf32, #tpu.memory_space<vmem>>) attributes {dimension_semantics = [#tpu.dimension_semantics<parallel>, #tpu.dimension_semantics<arbitrary>], iteration_bounds = array<i64: 2, 2>, scalar_prefetch = 0 : i64, scratch_operands = 2 : i64, tpu.core_type = #tpu.core_type<tc>, window_params = [{transform_indices = @transform_0, window_bounds = array<i64: 3>}, {transform_indices = @transform_1, window_bounds = array<i64: 1, 4, 256>}, {transform_indices = @transform_2, window_bounds = array<i64: 1, 128, 4>}, {transform_indices = @transform_3, window_bounds = array<i64: 1, 4, 256>}]} {
    %c0_i32 = arith.constant 0 : i32
    %0 = arith.cmpi eq, %arg1, %c0_i32 : i32
    %1 = arith.extui %0 : i1 to i32
    %c0_i32_0 = arith.constant 0 : i32
    %2 = arith.cmpi ne, %1, %c0_i32_0 : i32
    scf.if %2 {
      %cst_19 = arith.constant 0.000000e+00 : f32
      %39 = vector.broadcast %cst_19 : f32 to vector<4x4xf32>
      %c0_20 = arith.constant 0 : index
      %c0_21 = arith.constant 0 : index
      %40 = vector.load %arg7[%c0_20, %c0_21] : memref<4x4xf32, #tpu.memory_space<vmem>>, vector<4x4xf32>
      tpu.vector_store %arg7[%c0_20, %c0_21], %39 {strides = array<i32>} : memref<4x4xf32, #tpu.memory_space<vmem>>, vector<4x4xf32>,
      %c0_22 = arith.constant 0 : index
      %c0_23 = arith.constant 0 : index
      %c0_24 = arith.constant 0 : index
      %41 = vector.load %arg3[%c0_22, %c0_23, %c0_24] : memref<1x4x256xf32, #tpu.memory_space<vmem>>, vector<1x4x256xf32>
      %42 = vector.shape_cast %41 : vector<1x4x256xf32> to vector<4x256xf32>
      %43 = arith.truncf %42 : vector<4x256xf32> to vector<4x256xbf16>
      %c0_25 = arith.constant 0 : index
      %c0_26 = arith.constant 0 : index
      %44 = vector.load %arg6[%c0_25, %c0_26] : memref<4x256xbf16, #tpu.memory_space<vmem>>, vector<4x256xbf16>
      tpu.vector_store %arg6[%c0_25, %c0_26], %43 {strides = array<i32>} : memref<4x256xbf16, #tpu.memory_space<vmem>>, vector<4x256xbf16>,
    } else {
    }
    %c0 = arith.constant 0 : index
    %c0_1 = arith.constant 0 : index
    %c0_2 = arith.constant 0 : index
    %3 = vector.load %arg4[%c0, %c0_1, %c0_2] : memref<1x128x4xbf16, #tpu.memory_space<vmem>>, vector<1x128x4xbf16>
    %4 = vector.shape_cast %3 : vector<1x128x4xbf16> to vector<128x4xbf16>
    %c0_3 = arith.constant 0 : index
    %c0_4 = arith.constant 0 : index
    %5 = vector.load %arg6[%c0_3, %c0_4] : memref<4x256xbf16, #tpu.memory_space<vmem>>, vector<4x256xbf16>
    %cst = arith.constant dense<0.000000e+00> : vector<128x256xf32>
    %6 = tpu.matmul %4, %5, %cst {dimension_numbers = #tpu.dot_dimension_numbers<[1], [0], [0], [1], [0, 0, 1, 1], [], []>} : vector<128x4xbf16>, vector<4x256xbf16>, vector<128x256xf32> -> vector<128x256xf32>
    %cst_5 = arith.constant dense<0xFF800000> : vector<128xf32>
    %7 = vector.multi_reduction <maximumf>, %6, %cst_5 [1] : vector<128x256xf32> to vector<128xf32>
    %8 = vector.shape_cast %7 : vector<128xf32> to vector<128x1xf32>
    %9 = vector.broadcast %8 : vector<128x1xf32> to vector<128x256xf32>
    %10 = arith.subf %6, %9 : vector<128x256xf32>
    %11 = math.exp %10 : vector<128x256xf32>
    %cst_6 = arith.constant dense<0.000000e+00> : vector<128xf32>
    %12 = vector.multi_reduction <add>, %11, %cst_6 [1] : vector<128x256xf32> to vector<128xf32>
    %13 = vector.shape_cast %12 : vector<128xf32> to vector<128x1xf32>
    %14 = arith.truncf %11 : vector<128x256xf32> to vector<128x256xbf16>
    %15 = tpu.reciprocal %13 {approx = true} : vector<128x1xf32> -> vector<128x1xf32>
    %16 = arith.extf %4 : vector<128x4xbf16> to vector<128x4xf32>
    %17 = vector.broadcast %15 : vector<128x1xf32> to vector<128x4xf32>
    %18 = arith.mulf %17, %16 : vector<128x4xf32>
    %19 = tpu.transpose %18, [1, 0] : vector<128x4xf32> -> vector<4x128xf32>
    %20 = arith.truncf %19 : vector<4x128xf32> to vector<4x128xbf16>
    %cst_7 = arith.constant dense<0.000000e+00> : vector<4x256xf32>
    %21 = tpu.matmul %20, %14, %cst_7 {dimension_numbers = #tpu.dot_dimension_numbers<[1], [0], [0], [1], [0, 0, 1, 1], [], []>} : vector<4x128xbf16>, vector<128x256xbf16>, vector<4x256xf32> -> vector<4x256xf32>
    %c0_i32_8 = arith.constant 0 : i32
    %22 = arith.cmpi eq, %arg1, %c0_i32_8 : i32
    %23 = arith.extui %22 : i1 to i32
    %c0_i32_9 = arith.constant 0 : i32
    %24 = arith.cmpi ne, %23, %c0_i32_9 : i32
    scf.if %24 {
      %c0_19 = arith.constant 0 : index
      %c0_20 = arith.constant 0 : index
      %c0_21 = arith.constant 0 : index
      %39 = vector.load %arg5[%c0_19, %c0_20, %c0_21] : memref<1x4x256xf32, #tpu.memory_space<vmem>>, vector<1x4x256xf32>
      %40 = vector.shape_cast %39 : vector<1x4x256xf32> to vector<4x256xf32>
      %41 = vector.shape_cast %21 : vector<4x256xf32> to vector<1x4x256xf32>
      tpu.vector_store %arg5[%c0_19, %c0_20, %c0_21], %41 {strides = array<i32>} : memref<1x4x256xf32, #tpu.memory_space<vmem>>, vector<1x4x256xf32>,
    } else {
    }
    %c0_i32_10 = arith.constant 0 : i32
    %25 = arith.cmpi ne, %arg1, %c0_i32_10 : i32
    %26 = arith.extui %25 : i1 to i32
    %c0_i32_11 = arith.constant 0 : i32
    %27 = arith.cmpi ne, %26, %c0_i32_11 : i32
    scf.if %27 {
      %c0_19 = arith.constant 0 : index
      %c0_20 = arith.constant 0 : index
      %c0_21 = arith.constant 0 : index
      %39 = vector.load %arg5[%c0_19, %c0_20, %c0_21] : memref<1x4x256xf32, #tpu.memory_space<vmem>>, vector<1x4x256xf32>
      %40 = vector.shape_cast %39 : vector<1x4x256xf32> to vector<4x256xf32>
      %41 = arith.addf %40, %21 : vector<4x256xf32>
      %c0_22 = arith.constant 0 : index
      %c0_23 = arith.constant 0 : index
      %c0_24 = arith.constant 0 : index
      %42 = vector.load %arg5[%c0_22, %c0_23, %c0_24] : memref<1x4x256xf32, #tpu.memory_space<vmem>>, vector<1x4x256xf32>
      %43 = vector.shape_cast %42 : vector<1x4x256xf32> to vector<4x256xf32>
      %44 = vector.shape_cast %41 : vector<4x256xf32> to vector<1x4x256xf32>
      tpu.vector_store %arg5[%c0_22, %c0_23, %c0_24], %44 {strides = array<i32>} : memref<1x4x256xf32, #tpu.memory_space<vmem>>, vector<1x4x256xf32>,
    } else {
    }
    %c128_i32 = arith.constant 128 : i32
    %28 = arith.muli %arg1, %c128_i32 : i32
    %29 = tpu.assume_multiple %28, 128 : i32
    %c0_12 = arith.constant 0 : index
    %30 = arith.index_cast %29 : i32 to index
    %31 = vector.load %arg6[%c0_12, %30] : memref<4x256xbf16, #tpu.memory_space<vmem>>, vector<4x128xbf16>
    %c0_13 = arith.constant 0 : index
    %c0_14 = arith.constant 0 : index
    %32 = vector.load %arg7[%c0_13, %c0_14] : memref<4x4xf32, #tpu.memory_space<vmem>>, vector<4x4xf32>
    %cst_15 = arith.constant dense<0.000000e+00> : vector<4x4xf32>
    %33 = tpu.matmul %31, %4, %cst_15 {dimension_numbers = #tpu.dot_dimension_numbers<[1], [0], [0], [1], [0, 0, 1, 1], [], []>} : vector<4x128xbf16>, vector<128x4xbf16>, vector<4x4xf32> -> vector<4x4xf32>
    %34 = arith.addf %32, %33 : vector<4x4xf32>
    %c0_16 = arith.constant 0 : index
    %c0_17 = arith.constant 0 : index
    %35 = vector.load %arg7[%c0_16, %c0_17] : memref<4x4xf32, #tpu.memory_space<vmem>>, vector<4x4xf32>
    tpu.vector_store %arg7[%c0_16, %c0_17], %34 {strides = array<i32>} : memref<4x4xf32, #tpu.memory_space<vmem>>, vector<4x4xf32>,
    %c1_i32 = arith.constant 1 : i32
    %36 = arith.cmpi eq, %arg1, %c1_i32 : i32
    %37 = arith.extui %36 : i1 to i32
    %c0_i32_18 = arith.constant 0 : i32
    %38 = arith.cmpi ne, %37, %c0_i32_18 : i32
    scf.if %38 {
      %c0_19 = arith.constant 0 : index
      %39 = memref.load %arg2[%c0_19] : memref<3xf32, #tpu.memory_space<smem>>
      %c1 = arith.constant 1 : index
      %40 = memref.load %arg2[%c1] : memref<3xf32, #tpu.memory_space<smem>>
      %c2 = arith.constant 2 : index
      %41 = memref.load %arg2[%c2] : memref<3xf32, #tpu.memory_space<smem>>
      %c0_20 = arith.constant 0 : index
      %c0_21 = arith.constant 0 : index
      %42 = vector.load %arg7[%c0_20, %c0_21] : memref<4x4xf32, #tpu.memory_space<vmem>>, vector<4x4xf32>
      %cst_22 = arith.constant dense<0xFF800000> : vector<4xf32>
      %43 = vector.multi_reduction <maximumf>, %42, %cst_22 [1] : vector<4x4xf32> to vector<4xf32>
      %44 = vector.shape_cast %43 : vector<4xf32> to vector<4x1xf32>
      %45 = vector.broadcast %44 : vector<4x1xf32> to vector<4x4xf32>
      %46 = arith.subf %42, %45 : vector<4x4xf32>
      %47 = math.exp %46 : vector<4x4xf32>
      %cst_23 = arith.constant dense<0.000000e+00> : vector<4xf32>
      %48 = vector.multi_reduction <add>, %47, %cst_23 [1] : vector<4x4xf32> to vector<4xf32>
      %49 = vector.shape_cast %48 : vector<4xf32> to vector<4x1xf32>
      %50 = tpu.reciprocal %49 {approx = true} : vector<4x1xf32> -> vector<4x1xf32>
      %51 = vector.broadcast %50 : vector<4x1xf32> to vector<4x4xf32>
      %52 = arith.mulf %47, %51 : vector<4x4xf32>
      %53 = arith.truncf %52 : vector<4x4xf32> to vector<4x4xbf16>
      %cst_24 = arith.constant dense<0.000000e+00> : vector<4x256xf32>
      %54 = tpu.matmul %53, %5, %cst_24 {dimension_numbers = #tpu.dot_dimension_numbers<[1], [0], [0], [1], [0, 0, 1, 1], [], []>} : vector<4x4xbf16>, vector<4x256xbf16>, vector<4x256xf32> -> vector<4x256xf32>
      %c0_25 = arith.constant 0 : index
      %c0_26 = arith.constant 0 : index
      %c0_27 = arith.constant 0 : index
      %55 = vector.load %arg3[%c0_25, %c0_26, %c0_27] : memref<1x4x256xf32, #tpu.memory_space<vmem>>, vector<1x4x256xf32>
      %56 = vector.shape_cast %55 : vector<1x4x256xf32> to vector<4x256xf32>
      %c0_28 = arith.constant 0 : index
      %c0_29 = arith.constant 0 : index
      %c0_30 = arith.constant 0 : index
      %57 = vector.load %arg5[%c0_28, %c0_29, %c0_30] : memref<1x4x256xf32, #tpu.memory_space<vmem>>, vector<1x4x256xf32>
      %58 = vector.shape_cast %57 : vector<1x4x256xf32> to vector<4x256xf32>
      %59 = vector.broadcast %39 : f32 to vector<4x256xf32>
      %60 = arith.mulf %59, %58 : vector<4x256xf32>
      %61 = vector.broadcast %40 : f32 to vector<4x256xf32>
      %62 = arith.mulf %61, %54 : vector<4x256xf32>
      %63 = arith.addf %60, %62 : vector<4x256xf32>
      %cst_31 = arith.constant 2.000000e+00 : f32
      %64 = vector.broadcast %cst_31 : f32 to vector<4x256xf32>
      %65 = arith.mulf %64, %56 : vector<4x256xf32>
      %66 = arith.addf %63, %65 : vector<4x256xf32>
      %67 = vector.broadcast %41 : f32 to vector<4x256xf32>
      %68 = arith.mulf %67, %66 : vector<4x256xf32>
      %c0_32 = arith.constant 0 : index
      %c0_33 = arith.constant 0 : index
      %c0_34 = arith.constant 0 : index
      %69 = vector.load %arg5[%c0_32, %c0_33, %c0_34] : memref<1x4x256xf32, #tpu.memory_space<vmem>>, vector<1x4x256xf32>
      %70 = vector.shape_cast %69 : vector<1x4x256xf32> to vector<4x256xf32>
      %71 = vector.shape_cast %68 : vector<4x256xf32> to vector<1x4x256xf32>
      tpu.vector_store %arg5[%c0_32, %c0_33, %c0_34], %71 {strides = array<i32>} : memref<1x4x256xf32, #tpu.memory_space<vmem>>, vector<1x4x256xf32>,
    } else {
    }
    return
  }
  func.func @transform_0(%arg0: i32, %arg1: i32) -> i32 {
    %c0_i32 = arith.constant 0 : i32
    %c0_i32_0 = arith.constant 0 : i32
    return %c0_i32 : i32
  }
  func.func @transform_1(%arg0: i32, %arg1: i32) -> (i32, i32, i32) {
    %c0_i32 = arith.constant 0 : i32
    %c0_i32_0 = arith.constant 0 : i32
    %c0_i32_1 = arith.constant 0 : i32
    return %arg0, %c0_i32, %c0_i32_0 : i32, i32, i32
  }
  func.func @transform_2(%arg0: i32, %arg1: i32) -> (i32, i32, i32) {
    %c0_i32 = arith.constant 0 : i32
    %c0_i32_0 = arith.constant 0 : i32
    return %arg0, %arg1, %c0_i32 : i32, i32, i32
  }
  func.func @transform_3(%arg0: i32, %arg1: i32) -> (i32, i32, i32) {
    %c0_i32 = arith.constant 0 : i32
    %c0_i32_0 = arith.constant 0 : i32
    %c0_i32_1 = arith.constant 0 : i32
    return %arg0, %c0_i32, %c0_i32_0 : i32, i32, i32
  }
}

</mosaic_0001>

<llo_original>
// kernel: tpu_custom_call.1
$region0: #{tpu_custom_call.1}
  #allocation0 [shape = 'u32[]', space=smem, size = 0x4, offset = 0x4, fixed_abs, tag = 'smem constant byte address 0x4 - core index']
  #allocation1 [shape = 'u32[144,128]{1,0:T(1,128)}', space=vmem, size = 0x12000, scoped, tag = 'internal scratch']
  #allocation2 [shape = 'bf16[4,256]{1,0:T(4,128)(2,1)}', space=vmem, size = 0x800, scoped, tag = 'scratch operand']
  #allocation3 [shape = 'f32[4,4]{1,0:T(4,128)}', space=vmem, size = 0x800, scoped, tag = 'scratch operand']
  %s0 = inlined_call_operand.vmem [shape: f32[3], index: 0, kind: input, shape index: {}]
  %s1 = inlined_call_operand.vmem [shape: f32[2,4,256], index: 1, kind: input, shape index: {}]
  %s2 = inlined_call_operand.vmem [shape: bf16[2,256,4], index: 2, kind: input, shape index: {}]
  %s3 = inlined_call_operand.hbm [shape: f32[2,4,256], index: 3, kind: output, shape index: {}]
  %s4 = sld [smem:[#allocation0]]
  $region65: #{tpu_custom_call.1} parent=0
    _
  %s6 = ssub.s32 1, %s4
  %s7 = scalar_select 0, %s6, %s4
  $region1: #{tpu_custom_call.1} parent=0
    #allocation4 [shape = 'u8[512]{0}', space=smem, size = 0x200, scoped, tag = 'input window, operand 0, single buffered']
    #allocation5 [shape = 's32[2]{0}', space=sflag, size = 0x8, scoped, tag = 'scoped memory for tpu_custom_call.1']
    #allocation6 [shape = 's32[2]{0}', space=sflag, size = 0x8, scoped, tag = 'scoped memory for tpu_custom_call.1']
    #allocation7 [shape = 'u8[8192]{0}', space=vmem, size = 0x2000, scoped, tag = 'output window, operand 0']
    %8 = vsyncpa [#allocation6], 0
    %9 = vsyncpa [#allocation5], 0
    %s10 = scalar_lea.sflag [#allocation5], 1
    %11 = vsyncpa %s10, 0
    loop: start=0, step=1, limit=6
    $region2: #{tpu_custom_call.1} parent=1 // loop_pre_header
      _
    $region3: #{tpu_custom_call.1} parent=1 // loop_header
      %s13 = sphi 0, %s17
      %p14 = scmp.ge.s32.totalorder %s13, 6
      %s20 = sphi 0, %s32
      %s21 = sphi 0, %s28
      %s22 = sphi 0, %s20
      %s23 = sphi 0, %s21
      %s24 = sphi 0, %s22
      %s25 = sphi 0, %s23
      %s33 = sphi 0, %s33
      %s35 = sphi 0, %s33
      %s36 = sphi 0, %s35
      %s50 = sphi 0, %s36
      %s56 = sphi 0, %s58
      %s59 = sphi 0, %s56
      %s60 = sphi 0, %s59
      %s76 = sphi 0, %s60
      %s84 = sphi 0, %s86
      %s87 = sphi 0, %s84
      %s88 = sphi 0, %s87
      %s104 = sphi 0, %s88
      %s110 = sphi 0, %s112
      %s113 = sphi 0, %s110
      %s114 = sphi 0, %s113
      %s130 = sphi 0, %s114
    $region4: #{tpu_custom_call.1} parent=1 // loop_header_branch
      %16 = sbr.rel (%p14) target = $region8
    $region5: #{tpu_custom_call.1} parent=1 // loop_body
      %s18 = ssub.s32 %s13, 1
      %s19 = ssub.s32 %s13, 2
      %s26 = sadd.s32 1, %s21
      %p27 = scmp.ge.s32.totalorder %s26, 2
      %s28 = scalar_select %p27, 0, %s26
      %s29 = sadd.s32 1, %s20
      %s30 = scalar_select %p27, %s29, %s20
      %p31 = scmp.ge.s32.totalorder %s30, 2
      %s32 = scalar_select %p31, 0, %s30
      %s34 = sadd.s32 %s33, 1
      %p37 = scmp.eq.s32.totalorder %s13, 3
      %p38 = scmp.ne.s32.totalorder %s33, %s35
      %p39 = scmp.eq.s32.totalorder %s13, 0
      %p40 = por %p38, %p39
      %p41 = scmp.ne.s32.totalorder %s33, %s35
      %p42 = scmp.eq.s32.totalorder %s18, 3
      %p43 = por %p41, %p42
      %p44 = scmp.ne.s32.totalorder %s35, %s36
      %p45 = scmp.eq.s32.totalorder %s18, 0
      %p46 = por %p44, %p45
      %p47 = scmp.ne.s32.totalorder %s35, %s36
      %p48 = scmp.eq.s32.totalorder %s19, 3
      %p49 = por %p47, %p48
      %p51 = scmp.ne.s32.totalorder %s36, %s50
      %p52 = scmp.eq.s32.totalorder %s19, 0
      %p53 = por %p51, %p52
      %s54 = ssub.s32 %s20, %s32
      %p55 = scmp.eq.s32.totalorder %s54, 0
      %s57 = sadd.s32 %s56, 1
      %s58 = scalar_select %p55, %s56, %s57
      %p61 = pneg %p55
      %p62 = scmp.eq.s32.totalorder %s13, 3
      %p63 = por %p61, %p62
      %p64 = scmp.ne.s32.totalorder %s56, %s59
      %p65 = scmp.eq.s32.totalorder %s13, 0
      %p66 = por %p64, %p65
      %p67 = scmp.ne.s32.totalorder %s56, %s59
      %p68 = scmp.eq.s32.totalorder %s18, 3
      %p69 = por %p67, %p68
      %p70 = scmp.ne.s32.totalorder %s59, %s60
      %p71 = scmp.eq.s32.totalorder %s18, 0
      %p72 = por %p70, %p71
      %p73 = scmp.ne.s32.totalorder %s59, %s60
      %p74 = scmp.eq.s32.totalorder %s19, 3
      %p75 = por %p73, %p74
      %p77 = scmp.ne.s32.totalorder %s60, %s76
      %p78 = scmp.eq.s32.totalorder %s19, 0
      %p79 = por %p77, %p78
      %s80 = ssub.s32 %s20, %s32
      %s81 = ssub.s32 %s21, %s28
      %s82 = sor.u32 %s80, %s81
      %p83 = scmp.eq.s32.totalorder %s82, 0
      %s85 = sadd.s32 %s84, 1
      %s86 = scalar_select %p83, %s84, %s85
      %p89 = pneg %p83
      %p90 = scmp.eq.s32.totalorder %s13, 3
      %p91 = por %p89, %p90
      %p92 = scmp.ne.s32.totalorder %s84, %s87
      %p93 = scmp.eq.s32.totalorder %s13, 0
      %p94 = por %p92, %p93
      %p95 = scmp.ne.s32.totalorder %s84, %s87
      %p96 = scmp.eq.s32.totalorder %s18, 3
      %p97 = por %p95, %p96
      %p98 = scmp.ne.s32.totalorder %s87, %s88
      %p99 = scmp.eq.s32.totalorder %s18, 0
      %p100 = por %p98, %p99
      %p101 = scmp.ne.s32.totalorder %s87, %s88
      %p102 = scmp.eq.s32.totalorder %s19, 3
      %p103 = por %p101, %p102
      %p105 = scmp.ne.s32.totalorder %s88, %s104
      %p106 = scmp.eq.s32.totalorder %s19, 0
      %p107 = por %p105, %p106
      %s108 = ssub.s32 %s20, %s32
      %p109 = scmp.eq.s32.totalorder %s108, 0
      %s111 = sadd.s32 %s110, 1
      %s112 = scalar_select %p109, %s110, %s111
      %p115 = pneg %p109
      %p116 = scmp.eq.s32.totalorder %s13, 3
      %p117 = por %p115, %p116
      %p118 = scmp.ne.s32.totalorder %s110, %s113
      %p119 = scmp.eq.s32.totalorder %s13, 0
      %p120 = por %p118, %p119
      %p121 = scmp.ne.s32.totalorder %s110, %s113
      %p122 = scmp.eq.s32.totalorder %s18, 3
      %p123 = por %p121, %p122
      %p124 = scmp.ne.s32.totalorder %s113, %s114
      %p125 = scmp.eq.s32.totalorder %s18, 0
      %p126 = por %p124, %p125
      %p127 = scmp.ne.s32.totalorder %s113, %s114
      %p128 = scmp.eq.s32.totalorder %s19, 3
      %p129 = por %p127, %p128
      %p131 = scmp.ne.s32.totalorder %s114, %s130
      %p132 = scmp.eq.s32.totalorder %s19, 0
      %p133 = por %p131, %p132
      %p134 = scmp.le.s32.totalorder 1, %s13
      %p135 = scmp.lt.s32.totalorder %s13, 5
      %p136 = pnand %p134, %p135
      %p137 = pneg %p136
      // Predicated region
      $region9: #{tpu_custom_call.1} parent=5 // pred_check
        _
      $region10: #{tpu_custom_call.1} parent=5 // pred_check_branch
        %139 = sbr.rel (%p136) target = $region12
      $region11: #{tpu_custom_call.1} parent=5 // pred_region
        %s140 = ssub.s32 %s13, 1
        // Predicated region
        $region13: #{tpu_custom_call.1} parent=11 // pred_check
          %p141 = pneg %p46
        $region14: #{tpu_custom_call.1} parent=11 // pred_check_branch
          %143 = sbr.rel (%p141) target = $region16
        $region15: #{tpu_custom_call.1} parent=11 // pred_region
          %s145 = ssub.s32 16, 16
          %146 = vsyncadd [#allocation6], %s145
          %s148 = sshll.u32 %s0, 4
          %s149 = int_to_ptr.vmem [resolvable:$true] %s148
          %151 = dma.vmem_to_smem %s149, 16, [#allocation4], [#allocation6]
        $region16: #{tpu_custom_call.1} parent=11 // pred_fallthru
          _
      $region12: #{tpu_custom_call.1} parent=5 // pred_fallthru
        _
      %p152 = scmp.lt.s32.totalorder %s13, 4
      // Predicated region
      $region17: #{tpu_custom_call.1} parent=5 // pred_check
        %p153 = pneg %p152
      $region18: #{tpu_custom_call.1} parent=5 // pred_check_branch
        %155 = sbr.rel (%p153) target = $region20
      $region19: #{tpu_custom_call.1} parent=5 // pred_region
        // Predicated region
        $region21: #{tpu_custom_call.1} parent=19 // pred_check
          %p156 = pneg %p66
        $region22: #{tpu_custom_call.1} parent=19 // pred_check_branch
          %158 = sbr.rel (%p156) target = $region24
        $region23: #{tpu_custom_call.1} parent=19 // pred_region
          %p159 = scmp.lt.s32.totalorder %s20, 1
          %s160 = scalar_select %p159, %s20, 1
          %s161 = smul.addr %s160, 2
          %s162 = smul.addr %s161, 4
          %s163 = scalar_lea.vmem %s1, %s162
        $region24: #{tpu_custom_call.1} parent=19 // pred_fallthru
          _
        // Predicated region
        $region25: #{tpu_custom_call.1} parent=19 // pred_check
          %p164 = pneg %p94
        $region26: #{tpu_custom_call.1} parent=19 // pred_check_branch
          %166 = sbr.rel (%p164) target = $region28
        $region27: #{tpu_custom_call.1} parent=19 // pred_region
          %s167 = smul.u32 16, %s21
          %p168 = scmp.lt.s32.totalorder %s20, 1
          %s169 = scalar_select %p168, %s20, 1
          %p170 = scmp.lt.s32.totalorder %s167, 31
          %s171 = scalar_select %p170, %s167, 31
          %s172 = smul.addr %s169, 32
          %s173 = sadd.s32 %s171, %s172
          %s174 = smul.addr %s173, 4
          %s175 = scalar_lea.vmem %s2, %s174
          %s176 = smul.u32 16, %s21
        $region28: #{tpu_custom_call.1} parent=19 // pred_fallthru
          _
      $region20: #{tpu_custom_call.1} parent=5 // pred_fallthru
        _
      %p177 = scmp.le.s32.totalorder 1, %s13
      %p178 = scmp.lt.s32.totalorder %s13, 5
      %p179 = pnand %p177, %p178
      %p180 = pneg %p179
      // Predicated region
      $region29: #{tpu_custom_call.1} parent=5 // pred_check
        _
      $region30: #{tpu_custom_call.1} parent=5 // pred_check_branch
        %182 = sbr.rel (%p179) target = $region32
      $region31: #{tpu_custom_call.1} parent=5 // pred_region
        %s183 = ssub.s32 %s13, 1
        // Predicated region
        $region33: #{tpu_custom_call.1} parent=31 // pred_check
          %p184 = pneg %p46
        $region34: #{tpu_custom_call.1} parent=31 // pred_check_branch
          %186 = sbr.rel (%p184) target = $region36
        $region35: #{tpu_custom_call.1} parent=31 // pred_region
          %187 = dma.done [#allocation6], 16
        $region36: #{tpu_custom_call.1} parent=31 // pred_fallthru
          _
        %188 = sfence
        %p189 = pneg %p46
        %p190 = pneg %p43
        %p191 = scmp.lt.s32.totalorder %s22, 1
        %s192 = scalar_select %p191, %s22, 1
        %s193 = smul.addr %s192, 2
        %s194 = smul.addr %s193, 4
        %s195 = scalar_lea.vmem %s1, %s194
        %p196 = pneg %p72
        %p197 = pneg %p69
        %s198 = smul.u32 16, %s23
        %p199 = scmp.lt.s32.totalorder %s22, 1
        %s200 = scalar_select %p199, %s22, 1
        %p201 = scmp.lt.s32.totalorder %s198, 31
        %s202 = scalar_select %p201, %s198, 31
        %s203 = smul.addr %s200, 32
        %s204 = sadd.s32 %s202, %s203
        %s205 = smul.addr %s204, 4
        %s206 = scalar_lea.vmem %s2, %s205
        %p207 = pneg %p100
        %p208 = pneg %p97
        %p209 = pneg %p126
        %p210 = pneg %p123
        %s211 = sand.u32 %s113, 1
        %s212 = scalar_lea.sflag [#allocation5], %s211
        %s213 = sand.u32 %s113, 1
        %s214 = smul.addr %s213, 8
        %s215 = scalar_lea.vmem [#allocation7], %s214
        %p216 = scmp.lt.s32.totalorder %s22, 1
        %s217 = scalar_select %p216, %s22, 1
        %s218 = smul.addr %s217, 2
        %s219 = smul.addr %s218, 4
        %s220 = scalar_lea.vmem %s1, %s219
        %s221 = smul.u32 16, %s23
        %p222 = scmp.lt.s32.totalorder %s22, 1
        %s223 = scalar_select %p222, %s22, 1
        %p224 = scmp.lt.s32.totalorder %s221, 31
        %s225 = scalar_select %p224, %s221, 31
        %s226 = smul.addr %s223, 32
        %s227 = sadd.s32 %s225, %s226
        %s228 = smul.addr %s227, 4
        %s229 = scalar_lea.vmem %s2, %s228
        %s230 = smul.u32 16, %s23
        %p232 = scmp.eq.s32.totalorder %s23, 0
        // Predicated region
        $region37: #{tpu_custom_call.1} parent=31 // pred_check
          %p233 = pneg %p232
        $region38: #{tpu_custom_call.1} parent=31 // pred_check_branch
          %235 = sbr.rel (%p233) target = $region40
        $region39: #{tpu_custom_call.1} parent=31 // pred_region
          %vm236 = vcmask 27648
          %237 = vst.msk [vmem:[#allocation3] sm:$0xf] %vm236, 0.0
          %v238 = vld [vmem:[%s220] sm:$0xff]
          %v240 = vcombine.high %v238, %v238
          %v242 = vpack.c.bf16 %v238, %v238
          %v243 = vpack.c.bf16 %v240, %v240
          %v246 = vcombine.low %v242, %v243
          %v248 = vunpack.c.l.s4 1983009808
          %v249 = vunpack.c.0.s8 %v248
          %v250 = vlaneseq
          %v251 = vshrl.u32 %v250, 7
          %v252 = vsub.s32 %v249, %v251
          %v253 = vrot.slane %v246, %v252
          %255 = vst [vmem:[#allocation2] sm:$0xf] %v253
        $region40: #{tpu_custom_call.1} parent=31 // pred_fallthru
          _
        %v256 = vld [vmem:[%s229] sm:$0xf]
        %v257 = vld [vmem:[%s229 + $0x4] sm:$0xf]
        %v258 = vld [vmem:[%s229 + $0x8] sm:$0xf]
        %v259 = vld [vmem:[%s229 + $0xc] sm:$0xf]
        %v260 = vld [vmem:[%s229 + $0x10] sm:$0xf]
        %v261 = vld [vmem:[%s229 + $0x14] sm:$0xf]
        %v262 = vld [vmem:[%s229 + $0x18] sm:$0xf]
        %v263 = vld [vmem:[%s229 + $0x1c] sm:$0xf]
        %v264 = vld [vmem:[%s229 + $0x20] sm:$0xf]
        %v265 = vld [vmem:[%s229 + $0x24] sm:$0xf]
        %v266 = vld [vmem:[%s229 + $0x28] sm:$0xf]
        %v267 = vld [vmem:[%s229 + $0x2c] sm:$0xf]
        %v268 = vld [vmem:[%s229 + $0x30] sm:$0xf]
        %v269 = vld [vmem:[%s229 + $0x34] sm:$0xf]
        %v270 = vld [vmem:[%s229 + $0x38] sm:$0xf]
        %v271 = vld [vmem:[%s229 + $0x3c] sm:$0xf]
        %v272 = vld [vmem:[#allocation2] sm:$0xf]
        %v289 = vunpack.c.l.b16 %v256
        %v290 = vunpack.c.l.b16 %v257
        %v291 = vunpack.c.l.b16 %v258
        %v292 = vunpack.c.l.b16 %v259
        %v293 = vunpack.c.l.b16 %v260
        %v294 = vunpack.c.l.b16 %v261
        %v295 = vunpack.c.l.b16 %v262
        %v296 = vunpack.c.l.b16 %v263
        %v297 = vunpack.c.l.b16 %v264
        %v298 = vunpack.c.l.b16 %v265
        %v299 = vunpack.c.l.b16 %v266
        %v300 = vunpack.c.l.b16 %v267
        %v301 = vunpack.c.l.b16 %v268
        %v302 = vunpack.c.l.b16 %v269
        %v303 = vunpack.c.l.b16 %v270
        %v304 = vunpack.c.l.b16 %v271
        %v305 = vpack.c.b16 %v290, %v289
        %v306 = vpack.c.b16 %v292, %v291
        %v307 = vpack.c.b16 %v294, %v293
        %v308 = vpack.c.b16 %v296, %v295
        %v309 = vpack.c.b16 %v298, %v297
        %v310 = vpack.c.b16 %v300, %v299
        %v311 = vpack.c.b16 %v302, %v301
        %v312 = vpack.c.b16 %v304, %v303
        %v315 = vunpack.c.l.s4 1983009808
        %v316 = vunpack.c.0.s8 %v315
        %v317 = vlaneseq
        %v318 = vshrl.u32 %v317, 7
        %v319 = vsub.s32 %v316, %v318
        %v320 = vrot.slane %v272, %v319
        %v321 = vcombine.high %v320, %v320
        %vm322 = vcmask 31744
        %v324 = vsel %vm322, %v305, 0
        %v327 = vsel %vm322, %v306, 0
        %v330 = vsel %vm322, %v307, 0
        %v333 = vsel %vm322, %v308, 0
        %v336 = vsel %vm322, %v309, 0
        %v339 = vsel %vm322, %v310, 0
        %v342 = vsel %vm322, %v311, 0
        %v345 = vsel %vm322, %v312, 0
        %vm347 = vcmask 1041408
        %v349 = vsel %vm347, %v320, 0
        %v352 = vsel %vm347, %v321, 0
        %354 = vmatprep.subr.bf16.mxu0 %v352
        %355 = vmatpush1.bf16.msra.mxu0 %v349
        %356 = vmatprep.subr.bf16.mxu0 0
        %357 = vmatpush1.bf16.msra.mxu0 0
        %358 = vmatprep.subr.bf16.mxu0 0
        %359 = vmatpush1.bf16.msra.mxu0 0
        %360 = vmatprep.subr.bf16.mxu0 0
        %361 = vmatpush1.bf16.msra.mxu0 0
        %362 = vmatprep.subr.bf16.mxu0 0
        %363 = vmatpush1.bf16.msra.mxu0 0
        %364 = vmatprep.subr.bf16.mxu0 0
        %365 = vmatpush1.bf16.msra.mxu0 0
        %366 = vmatprep.subr.bf16.mxu0 0
        %367 = vmatpush1.bf16.msra.mxu0 0
        %368 = vmatprep.subr.bf16.mxu0 0
        %369 = vmatpush1.bf16.msra.mxu0 0
        %370 = vmatprep.subr.bf16.mxu0 0
        %371 = vmatpush1.bf16.msra.mxu0 0
        %372 = vmatprep.subr.bf16.mxu0 0
        %373 = vmatpush1.bf16.msra.mxu0 0
        %374 = vmatprep.subr.bf16.mxu0 0
        %375 = vmatpush1.bf16.msra.mxu0 0
        %376 = vmatprep.subr.bf16.mxu0 0
        %377 = vmatpush1.bf16.msra.mxu0 0
        %378 = vmatprep.subr.bf16.mxu0 0
        %379 = vmatpush1.bf16.msra.mxu0 0
        %380 = vmatprep.subr.bf16.mxu0 0
        %381 = vmatpush1.bf16.msra.mxu0 0
        %382 = vmatprep.subr.bf16.mxu0 0
        %383 = vmatpush1.bf16.msra.mxu0 0
        %384 = vmatprep.subr.bf16.mxu0 0
        %385 = vmatpush1.bf16.msra.mxu0 0
        %386 = vmatprep.mubr.bf16.mxu0 0
        %387 = vmatmul.mubr.bf16.gmra.mrb[0].mxu0 %v324
        %v388 = vpop.f32.mrb[0].mxu0
        %v389 = vadd.f32 0.0, %v388
        %v390 = vpop.f32.mrb[0].mxu0
        %v391 = vadd.f32 0.0, %v390
        %v392 = vpop.f32.mrb[0].mxu0
        %v393 = vadd.f32 0.0, %v392
        %v394 = vpop.f32.mrb[0].mxu0
        %v395 = vadd.f32 0.0, %v394
        %396 = vmatprep.mubr.bf16.mxu0 0
        %397 = vmatmul.mubr.bf16.gmra.mrb[0].mxu0 %v327
        %v398 = vpop.f32.mrb[0].mxu0
        %v399 = vadd.f32 0.0, %v398
        %v400 = vpop.f32.mrb[0].mxu0
        %v401 = vadd.f32 0.0, %v400
        %v402 = vpop.f32.mrb[0].mxu0
        %v403 = vadd.f32 0.0, %v402
        %v404 = vpop.f32.mrb[0].mxu0
        %v405 = vadd.f32 0.0, %v404
        %406 = vmatprep.mubr.bf16.mxu0 0
        %407 = vmatmul.mubr.bf16.gmra.mrb[0].mxu0 %v330
        %v408 = vpop.f32.mrb[0].mxu0
        %v409 = vadd.f32 0.0, %v408
        %v410 = vpop.f32.mrb[0].mxu0
        %v411 = vadd.f32 0.0, %v410
        %v412 = vpop.f32.mrb[0].mxu0
        %v413 = vadd.f32 0.0, %v412
        %v414 = vpop.f32.mrb[0].mxu0
        %v415 = vadd.f32 0.0, %v414
        %416 = vmatprep.mubr.bf16.mxu0 0
        %417 = vmatmul.mubr.bf16.gmra.mrb[0].mxu0 %v333
        %v418 = vpop.f32.mrb[0].mxu0
        %v419 = vadd.f32 0.0, %v418
        %v420 = vpop.f32.mrb[0].mxu0
        %v421 = vadd.f32 0.0, %v420
        %v422 = vpop.f32.mrb[0].mxu0
        %v423 = vadd.f32 0.0, %v422
        %v424 = vpop.f32.mrb[0].mxu0
        %v425 = vadd.f32 0.0, %v424
        %426 = vmatprep.mubr.bf16.mxu0 0
        %427 = vmatmul.mubr.bf16.gmra.mrb[0].mxu0 %v336
        %v428 = vpop.f32.mrb[0].mxu0
        %v429 = vadd.f32 0.0, %v428
        %v430 = vpop.f32.mrb[0].mxu0
        %v431 = vadd.f32 0.0, %v430
        %v432 = vpop.f32.mrb[0].mxu0
        %v433 = vadd.f32 0.0, %v432
        %v434 = vpop.f32.mrb[0].mxu0
        %v435 = vadd.f32 0.0, %v434
        %436 = vmatprep.mubr.bf16.mxu0 0
        %437 = vmatmul.mubr.bf16.gmra.mrb[0].mxu0 %v339
        %v438 = vpop.f32.mrb[0].mxu0
        %v439 = vadd.f32 0.0, %v438
        %v440 = vpop.f32.mrb[0].mxu0
        %v441 = vadd.f32 0.0, %v440
        %v442 = vpop.f32.mrb[0].mxu0
        %v443 = vadd.f32 0.0, %v442
        %v444 = vpop.f32.mrb[0].mxu0
        %v445 = vadd.f32 0.0, %v444
        %446 = vmatprep.mubr.bf16.mxu0 0
        %447 = vmatmul.mubr.bf16.gmra.mrb[0].mxu0 %v342
        %v448 = vpop.f32.mrb[0].mxu0
        %v449 = vadd.f32 0.0, %v448
        %v450 = vpop.f32.mrb[0].mxu0
        %v451 = vadd.f32 0.0, %v450
        %v452 = vpop.f32.mrb[0].mxu0
        %v453 = vadd.f32 0.0, %v452
        %v454 = vpop.f32.mrb[0].mxu0
        %v455 = vadd.f32 0.0, %v454
        %456 = vmatprep.mubr.bf16.mxu0 0
        %457 = vmatmul.mubr.bf16.gmra.mrb[0].mxu0 %v345
        %v458 = vpop.f32.mrb[0].mxu0
        %v459 = vadd.f32 0.0, %v458
        %v460 = vpop.f32.mrb[0].mxu0
        %v461 = vadd.f32 0.0, %v460
        %v462 = vpop.f32.mrb[0].mxu0
        %v463 = vadd.f32 0.0, %v462
        %v464 = vpop.f32.mrb[0].mxu0
        %v465 = vadd.f32 0.0, %v464
        %466 = vdwg.mxu0
        %v467 = vmax.f32 %v389, %v391
        %468 = vmax.xlane.f32.xlu0 %v467
        %v469 = vpop.xlane.xlu0 %468
        %v470 = vmax.f32 %v393, %v395
        %471 = vmax.xlane.f32.xlu0 %v470
        %v472 = vpop.xlane.xlu0 %471
        %v473 = vmax.f32 %v399, %v401
        %474 = vmax.xlane.f32.xlu0 %v473
        %v475 = vpop.xlane.xlu0 %474
        %v476 = vmax.f32 %v403, %v405
        %477 = vmax.xlane.f32.xlu0 %v476
        %v478 = vpop.xlane.xlu0 %477
        %v479 = vmax.f32 %v409, %v411
        %480 = vmax.xlane.f32.xlu0 %v479
        %v481 = vpop.xlane.xlu0 %480
        %v482 = vmax.f32 %v413, %v415
        %483 = vmax.xlane.f32.xlu0 %v482
        %v484 = vpop.xlane.xlu0 %483
        %v485 = vmax.f32 %v419, %v421
        %486 = vmax.xlane.f32.xlu0 %v485
        %v487 = vpop.xlane.xlu0 %486
        %v488 = vmax.f32 %v423, %v425
        %489 = vmax.xlane.f32.xlu0 %v488
        %v490 = vpop.xlane.xlu0 %489
        %v491 = vmax.f32 %v429, %v431
        %492 = vmax.xlane.f32.xlu0 %v491
        %v493 = vpop.xlane.xlu0 %492
        %v494 = vmax.f32 %v433, %v435
        %495 = vmax.xlane.f32.xlu0 %v494
        %v496 = vpop.xlane.xlu0 %495
        %v497 = vmax.f32 %v439, %v441
        %498 = vmax.xlane.f32.xlu0 %v497
        %v499 = vpop.xlane.xlu0 %498
        %v500 = vmax.f32 %v443, %v445
        %501 = vmax.xlane.f32.xlu0 %v500
        %v502 = vpop.xlane.xlu0 %501
        %v503 = vmax.f32 %v449, %v451
        %504 = vmax.xlane.f32.xlu0 %v503
        %v505 = vpop.xlane.xlu0 %504
        %v506 = vmax.f32 %v453, %v455
        %507 = vmax.xlane.f32.xlu0 %v506
        %v508 = vpop.xlane.xlu0 %507
        %v509 = vmax.f32 %v459, %v461
        %510 = vmax.xlane.f32.xlu0 %v509
        %v511 = vpop.xlane.xlu0 %510
        %v512 = vmax.f32 %v463, %v465
        %513 = vmax.xlane.f32.xlu0 %v512
        %v514 = vpop.xlane.xlu0 %513
        %v515 = vsub.f32 %v389, %v469
        %v516 = vsub.f32 %v391, %v469
        %v517 = vsub.f32 %v393, %v472
        %v518 = vsub.f32 %v395, %v472
        %v519 = vsub.f32 %v399, %v475
        %v520 = vsub.f32 %v401, %v475
        %v521 = vsub.f32 %v403, %v478
        %v522 = vsub.f32 %v405, %v478
        %v523 = vsub.f32 %v409, %v481
        %v524 = vsub.f32 %v411, %v481
        %v525 = vsub.f32 %v413, %v484
        %v526 = vsub.f32 %v415, %v484
        %v527 = vsub.f32 %v419, %v487
        %v528 = vsub.f32 %v421, %v487
        %v529 = vsub.f32 %v423, %v490
        %v530 = vsub.f32 %v425, %v490
        %v531 = vsub.f32 %v429, %v493
        %v532 = vsub.f32 %v431, %v493
        %v533 = vsub.f32 %v433, %v496
        %v534 = vsub.f32 %v435, %v496
        %v535 = vsub.f32 %v439, %v499
        %v536 = vsub.f32 %v441, %v499
        %v537 = vsub.f32 %v443, %v502
        %v538 = vsub.f32 %v445, %v502
        %v539 = vsub.f32 %v449, %v505
        %v540 = vsub.f32 %v451, %v505
        %v541 = vsub.f32 %v453, %v508
        %v542 = vsub.f32 %v455, %v508
        %v543 = vsub.f32 %v459, %v511
        %v544 = vsub.f32 %v461, %v511
        %v545 = vsub.f32 %v463, %v514
        %v546 = vsub.f32 %v465, %v514
        %v547 = vmul.f32 %v515, 1.442695
        %v548 = vpow.pop %v547
        %v549 = vmul.f32 %v516, 1.442695
        %v550 = vpow.pop %v549
        %v551 = vmul.f32 %v517, 1.442695
        %v552 = vpow.pop %v551
        %v553 = vmul.f32 %v518, 1.442695
        %v554 = vpow.pop %v553
        %v555 = vmul.f32 %v519, 1.442695
        %v556 = vpow.pop %v555
        %v557 = vmul.f32 %v520, 1.442695
        %v558 = vpow.pop %v557
        %v559 = vmul.f32 %v521, 1.442695
        %v560 = vpow.pop %v559
        %v561 = vmul.f32 %v522, 1.442695
        %v562 = vpow.pop %v561
        %v563 = vmul.f32 %v523, 1.442695
        %v564 = vpow.pop %v563
        %v565 = vmul.f32 %v524, 1.442695
        %v566 = vpow.pop %v565
        %v567 = vmul.f32 %v525, 1.442695
        %v568 = vpow.pop %v567
        %v569 = vmul.f32 %v526, 1.442695
        %v570 = vpow.pop %v569
        %v571 = vmul.f32 %v527, 1.442695
        %v572 = vpow.pop %v571
        %v573 = vmul.f32 %v528, 1.442695
        %v574 = vpow.pop %v573
        %v575 = vmul.f32 %v529, 1.442695
        %v576 = vpow.pop %v575
        %v577 = vmul.f32 %v530, 1.442695
        %v578 = vpow.pop %v577
        %v579 = vmul.f32 %v531, 1.442695
        %v580 = vpow.pop %v579
        %v581 = vmul.f32 %v532, 1.442695
        %v582 = vpow.pop %v581
        %v583 = vmul.f32 %v533, 1.442695
        %v584 = vpow.pop %v583
        %v585 = vmul.f32 %v534, 1.442695
        %v586 = vpow.pop %v585
        %v587 = vmul.f32 %v535, 1.442695
        %v588 = vpow.pop %v587
        %v589 = vmul.f32 %v536, 1.442695
        %v590 = vpow.pop %v589
        %v591 = vmul.f32 %v537, 1.442695
        %v592 = vpow.pop %v591
        %v593 = vmul.f32 %v538, 1.442695
        %v594 = vpow.pop %v593
        %v595 = vmul.f32 %v539, 1.442695
        %v596 = vpow.pop %v595
        %v597 = vmul.f32 %v540, 1.442695
        %v598 = vpow.pop %v597
        %v599 = vmul.f32 %v541, 1.442695
        %v600 = vpow.pop %v599
        %v601 = vmul.f32 %v542, 1.442695
        %v602 = vpow.pop %v601
        %v603 = vmul.f32 %v543, 1.442695
        %v604 = vpow.pop %v603
        %v605 = vmul.f32 %v544, 1.442695
        %v606 = vpow.pop %v605
        %v607 = vmul.f32 %v545, 1.442695
        %v608 = vpow.pop %v607
        %v609 = vmul.f32 %v546, 1.442695
        %v610 = vpow.pop %v609
        %v611 = vadd.f32 %v548, %v550
        %612 = vadd.xlane.f32.xlu0 %v611
        %v613 = vpop.xlane.xlu0 %612
        %v614 = vadd.f32 %v552, %v554
        %615 = vadd.xlane.f32.xlu0 %v614
        %v616 = vpop.xlane.xlu0 %615
        %v617 = vadd.f32 %v556, %v558
        %618 = vadd.xlane.f32.xlu0 %v617
        %v619 = vpop.xlane.xlu0 %618
        %v620 = vadd.f32 %v560, %v562
        %621 = vadd.xlane.f32.xlu0 %v620
        %v622 = vpop.xlane.xlu0 %621
        %v623 = vadd.f32 %v564, %v566
        %624 = vadd.xlane.f32.xlu0 %v623
        %v625 = vpop.xlane.xlu0 %624
        %v626 = vadd.f32 %v568, %v570
        %627 = vadd.xlane.f32.xlu0 %v626
        %v628 = vpop.xlane.xlu0 %627
        %v629 = vadd.f32 %v572, %v574
        %630 = vadd.xlane.f32.xlu0 %v629
        %v631 = vpop.xlane.xlu0 %630
        %v632 = vadd.f32 %v576, %v578
        %633 = vadd.xlane.f32.xlu0 %v632
        %v634 = vpop.xlane.xlu0 %633
        %v635 = vadd.f32 %v580, %v582
        %636 = vadd.xlane.f32.xlu0 %v635
        %v637 = vpop.xlane.xlu0 %636
        %v638 = vadd.f32 %v584, %v586
        %639 = vadd.xlane.f32.xlu0 %v638
        %v640 = vpop.xlane.xlu0 %639
        %v641 = vadd.f32 %v588, %v590
        %642 = vadd.xlane.f32.xlu0 %v641
        %v643 = vpop.xlane.xlu0 %642
        %v644 = vadd.f32 %v592, %v594
        %645 = vadd.xlane.f32.xlu0 %v644
        %v646 = vpop.xlane.xlu0 %645
        %v647 = vadd.f32 %v596, %v598
        %648 = vadd.xlane.f32.xlu0 %v647
        %v649 = vpop.xlane.xlu0 %648
        %v650 = vadd.f32 %v600, %v602
        %651 = vadd.xlane.f32.xlu0 %v650
        %v652 = vpop.xlane.xlu0 %651
        %v653 = vadd.f32 %v604, %v606
        %654 = vadd.xlane.f32.xlu0 %v653
        %v655 = vpop.xlane.xlu0 %654
        %v656 = vadd.f32 %v608, %v610
        %657 = vadd.xlane.f32.xlu0 %v656
        %v658 = vpop.xlane.xlu0 %657
        %v659 = vpack.c.bf16 %v552, %v548
        %v660 = vpack.c.bf16 %v554, %v550
        %v661 = vpack.c.bf16 %v560, %v556
        %v662 = vpack.c.bf16 %v562, %v558
        %v663 = vpack.c.bf16 %v568, %v564
        %v664 = vpack.c.bf16 %v570, %v566
        %v665 = vpack.c.bf16 %v576, %v572
        %v666 = vpack.c.bf16 %v578, %v574
        %v667 = vpack.c.bf16 %v584, %v580
        %v668 = vpack.c.bf16 %v586, %v582
        %v669 = vpack.c.bf16 %v592, %v588
        %v670 = vpack.c.bf16 %v594, %v590
        %v671 = vpack.c.bf16 %v600, %v596
        %v672 = vpack.c.bf16 %v602, %v598
        %v673 = vpack.c.bf16 %v608, %v604
        %v674 = vpack.c.bf16 %v610, %v606
        %v675 = vrcp.pop %v613
        %v676 = vrcp.pop %v616
        %v677 = vrcp.pop %v619
        %v678 = vrcp.pop %v622
        %v679 = vrcp.pop %v625
        %v680 = vrcp.pop %v628
        %v681 = vrcp.pop %v631
        %v682 = vrcp.pop %v634
        %v683 = vrcp.pop %v637
        %v684 = vrcp.pop %v640
        %v685 = vrcp.pop %v643
        %v686 = vrcp.pop %v646
        %v687 = vrcp.pop %v649
        %v688 = vrcp.pop %v652
        %v689 = vrcp.pop %v655
        %v690 = vrcp.pop %v658
        %v691 = vunpack.c.l.bf16 %v256
        %v692 = vunpack.c.l.bf16 %v257
        %v693 = vunpack.c.l.bf16 %v258
        %v694 = vunpack.c.l.bf16 %v259
        %v695 = vunpack.c.l.bf16 %v260
        %v696 = vunpack.c.l.bf16 %v261
        %v697 = vunpack.c.l.bf16 %v262
        %v698 = vunpack.c.l.bf16 %v263
        %v699 = vunpack.c.l.bf16 %v264
        %v700 = vunpack.c.l.bf16 %v265
        %v701 = vunpack.c.l.bf16 %v266
        %v702 = vunpack.c.l.bf16 %v267
        %v703 = vunpack.c.l.bf16 %v268
        %v704 = vunpack.c.l.bf16 %v269
        %v705 = vunpack.c.l.bf16 %v270
        %v706 = vunpack.c.l.bf16 %v271
        %v707 = vmul.f32 %v675, %v691
        %v708 = vmul.f32 %v676, %v692
        %v709 = vmul.f32 %v677, %v693
        %v710 = vmul.f32 %v678, %v694
        %v711 = vmul.f32 %v679, %v695
        %v712 = vmul.f32 %v680, %v696
        %v713 = vmul.f32 %v681, %v697
        %v714 = vmul.f32 %v682, %v698
        %v715 = vmul.f32 %v683, %v699
        %v716 = vmul.f32 %v684, %v700
        %v717 = vmul.f32 %v685, %v701
        %v718 = vmul.f32 %v686, %v702
        %v719 = vmul.f32 %v687, %v703
        %v720 = vmul.f32 %v688, %v704
        %v721 = vmul.f32 %v689, %v705
        %v722 = vmul.f32 %v690, %v706
        %723 = vxpose.xlu0.b32.start [1/16] %v707, 128
        %724 = vxpose.xlu0.b32.cont [2/16] %v708, 128
        %725 = vxpose.xlu0.b32.cont [3/16] %v709, 128
        %726 = vxpose.xlu0.b32.cont [4/16] %v710, 128
        %727 = vxpose.xlu0.b32.cont [5/16] %v711, 128
        %728 = vxpose.xlu0.b32.cont [6/16] %v712, 128
        %729 = vxpose.xlu0.b32.cont [7/16] %v713, 128
        %730 = vxpose.xlu0.b32.cont [8/16] %v714, 128
        %731 = vxpose.xlu0.b32.cont [9/16] %v715, 128
        %732 = vxpose.xlu0.b32.cont [10/16] %v716, 128
        %733 = vxpose.xlu0.b32.cont [11/16] %v717, 128
        %734 = vxpose.xlu0.b32.cont [12/16] %v718, 128
        %735 = vxpose.xlu0.b32.cont [13/16] %v719, 128
        %736 = vxpose.xlu0.b32.cont [14/16] %v720, 128
        %737 = vxpose.xlu0.b32.cont [15/16] %v721, 128
        %738 = vxpose.xlu0.b32.end [16/16] %v722, 128
        %v739 = vpop.trf.xlu0
        %v740 = vpop.trf.xlu0
        %v741 = vpop.trf.xlu0
        %v742 = vpop.trf.xlu0
        %v743 = vpop.trf.xlu0
        %v744 = vpop.trf.xlu0
        %v745 = vpop.trf.xlu0
        %v746 = vpop.trf.xlu0
        %v747 = vpop.trf.xlu0
        %v748 = vpop.trf.xlu0
        %v749 = vpop.trf.xlu0
        %v750 = vpop.trf.xlu0
        %v751 = vpop.trf.xlu0
        %v752 = vpop.trf.xlu0
        %v753 = vpop.trf.xlu0
        %v754 = vpop.trf.xlu0
        %v755 = vpack.c.bf16 %v739, %v739
        %756 = vmatprep.subr.bf16.mxu0 %v660
        %757 = vmatpush1.bf16.msra.mxu0 %v659
        %758 = vmatprep.subr.bf16.mxu0 %v662
        %759 = vmatpush1.bf16.msra.mxu0 %v661
        %760 = vmatprep.subr.bf16.mxu0 %v664
        %761 = vmatpush1.bf16.msra.mxu0 %v663
        %762 = vmatprep.subr.bf16.mxu0 %v666
        %763 = vmatpush1.bf16.msra.mxu0 %v665
        %764 = vmatprep.subr.bf16.mxu0 %v668
        %765 = vmatpush1.bf16.msra.mxu0 %v667
        %766 = vmatprep.subr.bf16.mxu0 %v670
        %767 = vmatpush1.bf16.msra.mxu0 %v669
        %768 = vmatprep.subr.bf16.mxu0 %v672
        %769 = vmatpush1.bf16.msra.mxu0 %v671
        %770 = vmatprep.subr.bf16.mxu0 %v674
        %771 = vmatpush1.bf16.msra.mxu0 %v673
        %772 = vmatprep.subr.bf16.mxu0 0
        %773 = vmatpush1.bf16.msra.mxu0 0
        %774 = vmatprep.subr.bf16.mxu0 0
        %775 = vmatpush1.bf16.msra.mxu0 0
        %776 = vmatprep.subr.bf16.mxu0 0
        %777 = vmatpush1.bf16.msra.mxu0 0
        %778 = vmatprep.subr.bf16.mxu0 0
        %779 = vmatpush1.bf16.msra.mxu0 0
        %780 = vmatprep.subr.bf16.mxu0 0
        %781 = vmatpush1.bf16.msra.mxu0 0
        %782 = vmatprep.subr.bf16.mxu0 0
        %783 = vmatpush1.bf16.msra.mxu0 0
        %784 = vmatprep.subr.bf16.mxu0 0
        %785 = vmatpush1.bf16.msra.mxu0 0
        %786 = vmatprep.subr.bf16.mxu0 0
        %787 = vmatpush1.bf16.msra.mxu0 0
        %788 = vmatprep.mubr.bf16.mxu0 0
        %789 = vmatmul.mubr.bf16.gmra.mrb[0].mxu0 %v755
        %v790 = vpop.f32.mrb[0].mxu0
        %v791 = vadd.f32 0.0, %v790
        %v792 = vpop.f32.mrb[0].mxu0
        %v793 = vadd.f32 0.0, %v792
        %v794 = vpop.f32.mrb[0].mxu0
        %v795 = vpop.f32.mrb[0].mxu0
        %796 = vdwg.mxu0
        // Predicated region
        $region41: #{tpu_custom_call.1} parent=31 // pred_check
          %p797 = pneg %p232
        $region42: #{tpu_custom_call.1} parent=31 // pred_check_branch
          %799 = sbr.rel (%p797) target = $region44
        $region43: #{tpu_custom_call.1} parent=31 // pred_region
          %v802 = vcombine.low %v791, %v793
          %804 = vst [vmem:[%s215] sm:$0xff] %v802
        $region44: #{tpu_custom_call.1} parent=31 // pred_fallthru
          _
        %p805 = scmp.ne.s32.totalorder %s23, 0
        // Predicated region
        $region45: #{tpu_custom_call.1} parent=31 // pred_check
          %p806 = pneg %p805
        $region46: #{tpu_custom_call.1} parent=31 // pred_check_branch
          %808 = sbr.rel (%p806) target = $region48
        $region47: #{tpu_custom_call.1} parent=31 // pred_region
          %v809 = vld [vmem:[%s215] sm:$0xff]
          %v812 = vcombine.low %v791, %v793
          %v814 = vadd.f32 %v809, %v812
          %815 = vst [vmem:[%s215] sm:$0xff] %v814
        $region48: #{tpu_custom_call.1} parent=31 // pred_fallthru
          _
        %s816 = smul.u32 %s23, 128
        %s817 = sshra.s32 %s816, 7
        %s818 = sand.u32 %s816, 127
        %s819 = smul.addr %s817, 2
        %s820 = scalar_lea.vmem [#allocation2], %s819
        %v821 = vld [vmem:[%s820] sm:$0x3]
        %v822 = vld [vmem:[#allocation3] sm:$0xf]
        %831 = vmatprep.subr.bf16.mxu0 0
        %832 = vmatpush1.bf16.msra.mxu0 %v305
        %833 = vmatprep.subr.bf16.mxu0 0
        %834 = vmatpush1.bf16.msra.mxu0 %v306
        %835 = vmatprep.subr.bf16.mxu0 0
        %836 = vmatpush1.bf16.msra.mxu0 %v307
        %837 = vmatprep.subr.bf16.mxu0 0
        %838 = vmatpush1.bf16.msra.mxu0 %v308
        %839 = vmatprep.subr.bf16.mxu0 0
        %840 = vmatpush1.bf16.msra.mxu0 %v309
        %841 = vmatprep.subr.bf16.mxu0 0
        %842 = vmatpush1.bf16.msra.mxu0 %v310
        %843 = vmatprep.subr.bf16.mxu0 0
        %844 = vmatpush1.bf16.msra.mxu0 %v311
        %845 = vmatprep.subr.bf16.mxu0 0
        %846 = vmatpush1.bf16.msra.mxu0 %v312
        %847 = vmatprep.subr.bf16.mxu0 0
        %848 = vmatpush1.bf16.msra.mxu0 0
        %849 = vmatprep.subr.bf16.mxu0 0
        %850 = vmatpush1.bf16.msra.mxu0 0
        %851 = vmatprep.subr.bf16.mxu0 0
        %852 = vmatpush1.bf16.msra.mxu0 0
        %853 = vmatprep.subr.bf16.mxu0 0
        %854 = vmatpush1.bf16.msra.mxu0 0
        %855 = vmatprep.subr.bf16.mxu0 0
        %856 = vmatpush1.bf16.msra.mxu0 0
        %857 = vmatprep.subr.bf16.mxu0 0
        %858 = vmatpush1.bf16.msra.mxu0 0
        %859 = vmatprep.subr.bf16.mxu0 0
        %860 = vmatpush1.bf16.msra.mxu0 0
        %861 = vmatprep.subr.bf16.mxu0 0
        %862 = vmatpush1.bf16.msra.mxu0 0
        %863 = vmatprep.mubr.bf16.mxu0 0
        %864 = vmatmul.mubr.bf16.gmra.mrb[0].mxu0 %v821
        %v865 = vpop.f32.mrb[0].mxu0
        %v866 = vadd.f32 0.0, %v865
        %v867 = vpop.f32.mrb[0].mxu0
        %v868 = vpop.f32.mrb[0].mxu0
        %v869 = vpop.f32.mrb[0].mxu0
        %870 = vdwg.mxu0
        %v871 = vadd.f32 %v822, %v866
        %vm872 = vcmask 27648
        %873 = vst.msk [vmem:[#allocation3] sm:$0xf] %vm872, %v871
        %p874 = scmp.eq.s32.totalorder %s23, 1
        // Predicated region
        $region49: #{tpu_custom_call.1} parent=31 // pred_check
          %p875 = pneg %p874
        $region50: #{tpu_custom_call.1} parent=31 // pred_check_branch
          %877 = sbr.rel (%p875) target = $region52
        $region51: #{tpu_custom_call.1} parent=31 // pred_region
          %s878 = sld [smem:[#allocation4]]
          %s879 = sld [smem:[#allocation4 + $0x1]]
          %s880 = sld [smem:[#allocation4 + $0x2]]
          %v881 = vld [vmem:[#allocation3] sm:$0xf]
          %v882 = vsel %vm872, %v881, -inf
          %883 = vmax.xlane.f32.xlu0 %v882
          %v884 = vpop.xlane.xlu0 %883
          %v885 = vsub.f32 %v881, %v884
          %v886 = vmul.f32 %v885, 1.442695
          %v887 = vpow.pop %v886
          %v888 = vsel %vm872, %v887, 0.0
          %889 = vadd.xlane.f32.xlu0 %v888
          %v890 = vpop.xlane.xlu0 %889
          %v891 = vrcp.pop %v890
          %v892 = vmul.f32 %v887, %v891
          %v893 = vpack.c.bf16 %v892, %v892
          %v895 = vsel %vm322, %v893, 0
          %897 = vmatprep.subr.bf16.mxu0 %v352
          %898 = vmatpush1.bf16.msra.mxu0 %v349
          %899 = vmatprep.subr.bf16.mxu0 0
          %900 = vmatpush1.bf16.msra.mxu0 0
          %901 = vmatprep.subr.bf16.mxu0 0
          %902 = vmatpush1.bf16.msra.mxu0 0
          %903 = vmatprep.subr.bf16.mxu0 0
          %904 = vmatpush1.bf16.msra.mxu0 0
          %905 = vmatprep.subr.bf16.mxu0 0
          %906 = vmatpush1.bf16.msra.mxu0 0
          %907 = vmatprep.subr.bf16.mxu0 0
          %908 = vmatpush1.bf16.msra.mxu0 0
          %909 = vmatprep.subr.bf16.mxu0 0
          %910 = vmatpush1.bf16.msra.mxu0 0
          %911 = vmatprep.subr.bf16.mxu0 0
          %912 = vmatpush1.bf16.msra.mxu0 0
          %913 = vmatprep.subr.bf16.mxu0 0
          %914 = vmatpush1.bf16.msra.mxu0 0
          %915 = vmatprep.subr.bf16.mxu0 0
          %916 = vmatpush1.bf16.msra.mxu0 0
          %917 = vmatprep.subr.bf16.mxu0 0
          %918 = vmatpush1.bf16.msra.mxu0 0
          %919 = vmatprep.subr.bf16.mxu0 0
          %920 = vmatpush1.bf16.msra.mxu0 0
          %921 = vmatprep.subr.bf16.mxu0 0
          %922 = vmatpush1.bf16.msra.mxu0 0
          %923 = vmatprep.subr.bf16.mxu0 0
          %924 = vmatpush1.bf16.msra.mxu0 0
          %925 = vmatprep.subr.bf16.mxu0 0
          %926 = vmatpush1.bf16.msra.mxu0 0
          %927 = vmatprep.subr.bf16.mxu0 0
          %928 = vmatpush1.bf16.msra.mxu0 0
          %929 = vmatprep.mubr.bf16.mxu0 0
          %930 = vmatmul.mubr.bf16.gmra.mrb[0].mxu0 %v895
          %v931 = vpop.f32.mrb[0].mxu0
          %v932 = vadd.f32 0.0, %v931
          %v933 = vpop.f32.mrb[0].mxu0
          %v934 = vadd.f32 0.0, %v933
          %v935 = vpop.f32.mrb[0].mxu0
          %v936 = vpop.f32.mrb[0].mxu0
          %937 = vdwg.mxu0
          %v938 = vld [vmem:[%s220] sm:$0xff]
          %v939 = vld [vmem:[%s215] sm:$0xff]
          %v940 = vstv %s878
          %v941 = vmul.f32 %v940, %v939
          %v942 = vstv %s879
          %v943 = vmul.f32 %v942, %v932
          %v944 = vmul.f32 %v942, %v934
          %v947 = vcombine.low %v943, %v944
          %v949 = vadd.f32 %v941, %v947
          %v950 = vmul.f32 %v938, 2.0
          %v951 = vadd.f32 %v949, %v950
          %v952 = vstv %s880
          %v953 = vmul.f32 %v952, %v951
          %954 = vst [vmem:[%s215] sm:$0xff] %v953
        $region52: #{tpu_custom_call.1} parent=31 // pred_fallthru
          _
        %s955 = sand.u32 %s113, 1
        %s956 = scalar_lea.sflag [#allocation5], %s955
        %s957 = sand.u32 %s113, 1
        %s958 = smul.addr %s957, 8
        %s959 = scalar_lea.vmem [#allocation7], %s958
        // Predicated region
        $region53: #{tpu_custom_call.1} parent=31 // pred_check
          %p960 = pneg %p123
        $region54: #{tpu_custom_call.1} parent=31 // pred_check_branch
          %962 = sbr.rel (%p960) target = $region56
        $region55: #{tpu_custom_call.1} parent=31 // pred_region
          %s964 = ssub.s32 128, 128
          %965 = vsyncadd %s956, %s964
          %s966 = smul.addr %s22, 2
          %s967 = smul.addr %s966, 64
          %s968 = scalar_lea.hbm %s3, %s967
          %s970 = sshll.u32 %s959, 4
          %s971 = int_to_ptr.vmem [resolvable:$true] %s970
          %973 = dma.vmem_to_hbm [thread:$0]  %s971, 128, %s968, %s956
        $region56: #{tpu_custom_call.1} parent=31 // pred_fallthru
          _
      $region32: #{tpu_custom_call.1} parent=5 // pred_fallthru
        _
      %p974 = scmp.le.s32.totalorder 2, %s13
      // Predicated region
      $region57: #{tpu_custom_call.1} parent=5 // pred_check
        %p975 = pneg %p974
      $region58: #{tpu_custom_call.1} parent=5 // pred_check_branch
        %977 = sbr.rel (%p975) target = $region60
      $region59: #{tpu_custom_call.1} parent=5 // pred_region
        %s978 = ssub.s32 %s13, 2
        // Predicated region
        $region61: #{tpu_custom_call.1} parent=59 // pred_check
          %p979 = pneg %p129
        $region62: #{tpu_custom_call.1} parent=59 // pred_check_branch
          %981 = sbr.rel (%p979) target = $region64
        $region63: #{tpu_custom_call.1} parent=59 // pred_region
          %s982 = sand.u32 %s114, 1
          %s983 = scalar_lea.sflag [#allocation5], %s982
          %s984 = sand.u32 %s114, 1
          %s985 = smul.addr %s984, 8
          %s986 = scalar_lea.vmem [#allocation7], %s985
          %987 = dma.done %s983, 128
        $region64: #{tpu_custom_call.1} parent=59 // pred_fallthru
          _
      $region60: #{tpu_custom_call.1} parent=5 // pred_fallthru
        _
    $region6: #{tpu_custom_call.1} parent=1 // loop_footer
      %s17 = sadd.s32 1, %s13
    $region7: #{tpu_custom_call.1} parent=1 // loop_footer_branch
      %12 = sbr.rel target = $region3
    $region8: #{tpu_custom_call.1} parent=1 // loop_exit
      _
    %988 = vsyncpa [#allocation5], 1
    %s989 = scalar_lea.sflag [#allocation5], 1
    %990 = vsyncpa %s989, 1
    %991 = vsyncpa [#allocation6], 1
    %s992 = scalar_lea.sflag [#allocation6], 1
    %993 = vsyncpa %s992, 1

</llo_original>
